<compile_context>
chip_gen: v7x
topology: tpu7x:2x2x1
jax: 0.10.0
libtpu: 0.0.40
codegen_flags: <defaults>
</compile_context>

<pallas_src>
import functools

import jax
import jax.numpy as jnp
from jax.experimental import pallas as pl
from jax.experimental.pallas import tpu as pltpu


def _round_up(x, m):
    return (x + m - 1) // m * m


def _conv1d_kernel(x_ref, lft_ref, rgt_ref, w_ref, b_ref, o_ref, *,
                   k, tile_l, pad_l, halo_blk, seq_len, compute_dtype):
    # x_ref   : (tile_l,   C_in)   current L-tile (input dtype, e.g. f32)
    # lft_ref : (halo_blk, C_in)   aligned block just before the tile
    # rgt_ref : (halo_blk, C_in)   aligned block just after the tile
    # w_ref   : (K, C_in, C_out)   weights, tap-major (compute dtype)
    # b_ref   : (1, C_out)         bias (f32)
    # o_ref   : (tile_l, C_out)
    i = pl.program_id(1)

    # Assemble the halo window from three sublane-aligned pieces, then zero
    # every row whose original index falls outside [0, seq_len).  This single
    # mask implements ConstantPad1d's left/right zeros AND discards the
    # garbage rows of ragged edge blocks, so no host-side padding is needed.
    win = jnp.concatenate([lft_ref[...], x_ref[...], rgt_ref[...]], axis=0)
    n_win = tile_l + 2 * halo_blk
    row = jax.lax.broadcasted_iota(jnp.int32, (n_win, 1), 0)
    orig = row + (i * tile_l - halo_blk)          # original sequence index
    win = jnp.where((orig >= 0) & (orig < seq_len), win, 0)
    win = win.astype(compute_dtype)               # VPU cast, hidden under DMA

    c_out = o_ref.shape[-1]
    prec = (jax.lax.Precision.HIGHEST
            if jnp.dtype(compute_dtype) == jnp.dtype(jnp.float32) else None)

    # K per-tap matmuls accumulating in f32 -- no im2col slab; the window is
    # read in place.  (If ever MXU-bound on v6e/v7x, fuse taps pairwise for a
    # 256-deep contraction; mem-bound here so depth C_in is fine.)
    acc = jnp.zeros((tile_l, c_out), jnp.float32)
    base = halo_blk - pad_l
    for j in range(k):
        acc += jnp.dot(win[base + j: base + j + tile_l, :], w_ref[j],
                       precision=prec, preferred_element_type=jnp.float32)
    o_ref[...] = (acc + b_ref[...]).astype(o_ref.dtype)


def conv_forward(x, weight, bias, *, kernel_size, pad_type,
                 out_dtype=None, compute_dtype=jnp.bfloat16,
                 max_tile_l=4096, vmem_budget_bytes=40 * 1024 * 1024):
    """Equivalent of Conv.forward.

    x       : (B, L, C_in)      -- tensor the PyTorch module receives
    weight  : (C_out, C_in, K)  -- PyTorch Conv1d weight layout
    bias    : (C_out,)
    returns : (B, L, C_out)     -- dtype = out_dtype (default x.dtype)
    """
    B, L, C_in = x.shape
    C_out = weight.shape[0]
    K = kernel_size
    if pad_type == 'left':
        pad_l, pad_r = K - 1, 0
    else:
        pad_l, pad_r = K // 2, (K - 1) // 2
    if out_dtype is None:
        out_dtype = x.dtype

    xb = jnp.dtype(x.dtype).itemsize
    ob = jnp.dtype(out_dtype).itemsize
    cb = jnp.dtype(compute_dtype).itemsize
    SUB = max(8, 32 // xb)                        # sublane pack granularity
    halo_blk = _round_up(max(pad_l, pad_r, 1), SUB)

    # ---- L tile size from the VMEM budget (biggest perf lever) -------------
    # per-output-row bytes: double-buffered x tile + out tile, plus in-kernel
    # window copies (x dtype + compute dtype) and the f32 accumulator.
    per_row = (2 * xb * C_in + 2 * ob * C_out + (xb + cb) * C_in + 4 * C_out)
    fixed = 2 * K * C_in * C_out * cb + 8 * C_out + 4 * halo_blk * C_in * xb
    tile_budget = max((vmem_budget_bytes - fixed) // per_row, SUB)
    tile_l = int(min(tile_budget, max_tile_l, _round_up(L, SUB)))
    if tile_l > 512:
        # v7x has 2 TensorCores: keep >=4 parallel grid blocks when possible.
        min_blocks = pl.cdiv(4, B)
        tile_l = max(512, min(tile_l, _round_up(pl.cdiv(L, min_blocks), SUB)))
    tile_l = _round_up(tile_l, halo_blk)
    num_l = pl.cdiv(L, tile_l)
    nblk = tile_l // halo_blk                     # halo blocks per L tile
    n_hblk = pl.cdiv(L, halo_blk)                 # halo blocks covering L

    # ---- tiny host-side weight/bias prep (no activation prepass!) ----------
    w_kio = jnp.transpose(weight, (2, 1, 0)).astype(compute_dtype)  # (K,Ci,Co)
    b2d = bias.reshape(1, C_out).astype(jnp.float32)

    kern = functools.partial(
        _conv1d_kernel, k=K, tile_l=tile_l, pad_l=pad_l,
        halo_blk=halo_blk, seq_len=L, compute_dtype=compute_dtype)

    # Three views of the same x array: the current tile plus two small
    # aligned halo blocks (clamped at the edges; invalid rows masked in-kernel).
    cur_spec = pl.BlockSpec((pl.Squeezed(), tile_l, C_in),
                            lambda b, i: (b, i, 0))
    # NOTE(v5e): if xprof still shows exposed input DMA at large tile_l, add
    # pipeline_mode=pl.Buffered(3) to cur_spec (plenty of VMEM headroom there).
    lft_spec = pl.BlockSpec((pl.Squeezed(), halo_blk, C_in),
                            lambda b, i: (b, jnp.maximum(i * nblk - 1, 0), 0))
    rgt_spec = pl.BlockSpec(
        (pl.Squeezed(), halo_blk, C_in),
        lambda b, i: (b, jnp.minimum((i + 1) * nblk, n_hblk - 1), 0))
    # Constant index maps -> weight/bias are DMA'd once and stay VMEM-resident.
    # NOTE(v7x): for very large C_in*C_out, single-buffer these constant blocks
    # (pipeline_mode=pl.Buffered(1)) to halve their VMEM footprint.
    w_spec = pl.BlockSpec((K, C_in, C_out), lambda b, i: (0, 0, 0))
    b_spec = pl.BlockSpec((1, C_out), lambda b, i: (0, 0))
    out_spec = pl.BlockSpec((pl.Squeezed(), tile_l, C_out),
                            lambda b, i: (b, i, 0))

    return pl.pallas_call(
        kern,
        out_shape=jax.ShapeDtypeStruct((B, L, C_out), out_dtype),
        grid_spec=pltpu.PrefetchScalarGridSpec(
            num_scalar_prefetch=0,
            grid=(B, num_l),
            in_specs=[cur_spec, lft_spec, rgt_spec, w_spec, b_spec],
            out_specs=out_spec),
        compiler_params=pltpu.CompilerParams(
            dimension_semantics=("parallel", "parallel"),
            vmem_limit_bytes=64 * 1024 * 1024),
    )(x, x, x, w_kio, b2d)


def _reference(x, weight, bias, *, kernel_size, pad_type):
    """Pure-JAX f32 reference matching torch Conv(ConstantPad1d+Conv1d)."""
    K = kernel_size
    if pad_type == 'left':
        pad_l, pad_r = K - 1, 0
    else:
        pad_l, pad_r = K // 2, (K - 1) // 2
    x_pad = jnp.pad(x, ((0, 0), (pad_l, pad_r), (0, 0)))
    L = x.shape[1]
    out = jnp.zeros((x.shape[0], L, weight.shape[0]), jnp.float32)
    for j in range(K):
        out = out + jnp.einsum('blc,oc->blo',
                               x_pad[:, j:j + L, :], weight[:, :, j],
                               precision=jax.lax.Precision.HIGHEST)
    return (out + bias[None, None, :]).astype(x.dtype)


if __name__ == "__main__":
    # Small deterministic configs covering: odd-K 'left', even-K 'both',
    # multi-tile + ragged-edge + halo-crossing (forced tile_l=8) with the
    # exact f32 compute path.
    B = 2
    C_in, C_out = 32, 16
    configs = [
        # (K, pad_type, L, max_tile_l, compute_dtype, atol)
        (3, 'left', 8, 4096, jnp.bfloat16, 3e-2),
        (4, 'both', 8, 4096, jnp.bfloat16, 3e-2),
        (5, 'both', 12, 8, jnp.float32, 1e-4),
    ]

    key = jax.random.PRNGKey(0)
    for K, pad_type, L, max_tile_l, cdt, tol in configs:
        key, kx, kw, kb = jax.random.split(key, 4)
        x = jax.random.normal(kx, (B, L, C_in), dtype=jnp.float32)
        fan_in = C_in * K
        bound = 1.0 / (fan_in ** 0.5)
        weight = jax.random.uniform(kw, (C_out, C_in, K), jnp.float32,
                                    minval=-bound, maxval=bound)
        bias = jax.random.uniform(kb, (C_out,), jnp.float32,
                                  minval=-bound, maxval=bound)

        fwd = jax.jit(functools.partial(
            conv_forward, kernel_size=K, pad_type=pad_type,
            max_tile_l=max_tile_l, compute_dtype=cdt))
        out = jax.block_until_ready(fwd(x, weight, bias))

        ref = _reference(x, weight, bias, kernel_size=K, pad_type=pad_type)
        assert out.shape == (B, L, C_out)
        assert jnp.allclose(out, ref, atol=tol, rtol=tol), \
            f"mismatch for K={K}, pad_type={pad_type}, L={L}"

    print("KERNEL_OK")
</pallas_src>

<mosaic_0001>
module attributes {stable_mosaic.version = 11 : i64} {
  func.func @_conv1d_kernel(%arg0: i32, %arg1: i32, %arg2: memref<1x8x32xf32, #tpu.memory_space<vmem>>, %arg3: memref<1x8x32xf32, #tpu.memory_space<vmem>>, %arg4: memref<1x8x32xf32, #tpu.memory_space<vmem>>, %arg5: memref<3x32x16xbf16, #tpu.memory_space<vmem>>, %arg6: memref<1x16xf32, #tpu.memory_space<vmem>>, %arg7: memref<1x8x16xf32, #tpu.memory_space<vmem>>) attributes {dimension_semantics = [#tpu.dimension_semantics<parallel>, #tpu.dimension_semantics<parallel>], iteration_bounds = array<i64: 2, 1>, scalar_prefetch = 0 : i64, scratch_operands = 0 : i64, tpu.core_type = #tpu.core_type<tc>, window_params = [{transform_indices = @transform_0, window_bounds = array<i64: 1, 8, 32>}, {transform_indices = @transform_1, window_bounds = array<i64: 1, 8, 32>}, {transform_indices = @transform_2, window_bounds = array<i64: 1, 8, 32>}, {pipeline_mode = #tpu.pipeline_mode<synchronous>, transform_indices = @transform_3, window_bounds = array<i64: 3, 32, 16>}, {pipeline_mode = #tpu.pipeline_mode<synchronous>, transform_indices = @transform_4, window_bounds = array<i64: 1, 16>}, {transform_indices = @transform_5, window_bounds = array<i64: 1, 8, 16>}]} {
    %c0 = arith.constant 0 : index
    %c0_0 = arith.constant 0 : index
    %c0_1 = arith.constant 0 : index
    %0 = vector.load %arg3[%c0, %c0_0, %c0_1] : memref<1x8x32xf32, #tpu.memory_space<vmem>>, vector<1x8x32xf32>
    %1 = vector.shape_cast %0 : vector<1x8x32xf32> to vector<8x32xf32>
    %c0_2 = arith.constant 0 : index
    %c0_3 = arith.constant 0 : index
    %c0_4 = arith.constant 0 : index
    %2 = vector.load %arg2[%c0_2, %c0_3, %c0_4] : memref<1x8x32xf32, #tpu.memory_space<vmem>>, vector<1x8x32xf32>
    %3 = vector.shape_cast %2 : vector<1x8x32xf32> to vector<8x32xf32>
    %c0_5 = arith.constant 0 : index
    %c0_6 = arith.constant 0 : index
    %c0_7 = arith.constant 0 : index
    %4 = vector.load %arg4[%c0_5, %c0_6, %c0_7] : memref<1x8x32xf32, #tpu.memory_space<vmem>>, vector<1x8x32xf32>
    %5 = vector.shape_cast %4 : vector<1x8x32xf32> to vector<8x32xf32>
    %6 = tpu.concatenate %1, %3, %5 in 0 : vector<8x32xf32>, vector<8x32xf32>, vector<8x32xf32> -> vector<24x32xf32>
    %7 = tpu.iota {dimensions = array<i32: 0>} : vector<24x1xi32>
    %c8_i32 = arith.constant 8 : i32
    %8 = arith.muli %arg1, %c8_i32 : i32
    %c8_i32_8 = arith.constant 8 : i32
    %9 = arith.subi %8, %c8_i32_8 : i32
    %10 = vector.broadcast %9 : i32 to vector<24x1xi32>
    %11 = arith.addi %7, %10 : vector<24x1xi32>
    %c0_i32 = arith.constant 0 : i32
    %12 = vector.broadcast %c0_i32 : i32 to vector<24x1xi32>
    %13 = arith.cmpi sge, %11, %12 : vector<24x1xi32>
    %c8_i32_9 = arith.constant 8 : i32
    %14 = vector.broadcast %c8_i32_9 : i32 to vector<24x1xi32>
    %15 = arith.cmpi slt, %11, %14 : vector<24x1xi32>
    %16 = arith.andi %13, %15 : vector<24x1xi1>
    %c0_i32_10 = arith.constant 0 : i32
    %17 = arith.sitofp %c0_i32_10 : i32 to f32
    %18 = vector.shape_cast %16 : vector<24x1xi1> to vector<24x1xi1>
    %19 = vector.broadcast %18 : vector<24x1xi1> to vector<24x32xi1>
    %20 = vector.broadcast %17 : f32 to vector<24x32xf32>
    %21 = arith.select %19, %6, %20 : vector<24x32xi1>, vector<24x32xf32>
    %22 = arith.truncf %21 : vector<24x32xf32> to vector<24x32xbf16>
    %cst = arith.constant 0.000000e+00 : f32
    %23 = vector.broadcast %cst : f32 to vector<8x16xf32>
    %24 = vector.extract_strided_slice %22 {offsets = [6, 0], sizes = [8, 32], strides = [1, 1]} : vector<24x32xbf16> to vector<8x32xbf16>
    %c0_11 = arith.constant 0 : index
    %c0_12 = arith.constant 0 : index
    %c0_13 = arith.constant 0 : index
    %25 = vector.load %arg5[%c0_11, %c0_12, %c0_13] : memref<3x32x16xbf16, #tpu.memory_space<vmem>>, vector<1x32x16xbf16>
    %26 = vector.shape_cast %25 : vector<1x32x16xbf16> to vector<32x16xbf16>
    %cst_14 = arith.constant dense<0.000000e+00> : vector<8x16xf32>
    %27 = tpu.matmul %24, %26, %cst_14 {dimension_numbers = #tpu.dot_dimension_numbers<[1], [0], [0], [1], [0, 0, 1, 1], [], []>} : vector<8x32xbf16>, vector<32x16xbf16>, vector<8x16xf32> -> vector<8x16xf32>
    %28 = arith.addf %23, %27 : vector<8x16xf32>
    %29 = vector.extract_strided_slice %22 {offsets = [7, 0], sizes = [8, 32], strides = [1, 1]} : vector<24x32xbf16> to vector<8x32xbf16>
    %c1 = arith.constant 1 : index
    %c0_15 = arith.constant 0 : index
    %c0_16 = arith.constant 0 : index
    %30 = vector.load %arg5[%c1, %c0_15, %c0_16] : memref<3x32x16xbf16, #tpu.memory_space<vmem>>, vector<1x32x16xbf16>
    %31 = vector.shape_cast %30 : vector<1x32x16xbf16> to vector<32x16xbf16>
    %cst_17 = arith.constant dense<0.000000e+00> : vector<8x16xf32>
    %32 = tpu.matmul %29, %31, %cst_17 {dimension_numbers = #tpu.dot_dimension_numbers<[1], [0], [0], [1], [0, 0, 1, 1], [], []>} : vector<8x32xbf16>, vector<32x16xbf16>, vector<8x16xf32> -> vector<8x16xf32>
    %33 = arith.addf %28, %32 : vector<8x16xf32>
    %34 = vector.extract_strided_slice %22 {offsets = [8, 0], sizes = [8, 32], strides = [1, 1]} : vector<24x32xbf16> to vector<8x32xbf16>
    %c2 = arith.constant 2 : index
    %c0_18 = arith.constant 0 : index
    %c0_19 = arith.constant 0 : index
    %35 = vector.load %arg5[%c2, %c0_18, %c0_19] : memref<3x32x16xbf16, #tpu.memory_space<vmem>>, vector<1x32x16xbf16>
    %36 = vector.shape_cast %35 : vector<1x32x16xbf16> to vector<32x16xbf16>
    %cst_20 = arith.constant dense<0.000000e+00> : vector<8x16xf32>
    %37 = tpu.matmul %34, %36, %cst_20 {dimension_numbers = #tpu.dot_dimension_numbers<[1], [0], [0], [1], [0, 0, 1, 1], [], []>} : vector<8x32xbf16>, vector<32x16xbf16>, vector<8x16xf32> -> vector<8x16xf32>
    %38 = arith.addf %33, %37 : vector<8x16xf32>
    %c0_21 = arith.constant 0 : index
    %c0_22 = arith.constant 0 : index
    %39 = vector.load %arg6[%c0_21, %c0_22] : memref<1x16xf32, #tpu.memory_space<vmem>>, vector<1x16xf32>
    %40 = vector.broadcast %39 : vector<1x16xf32> to vector<8x16xf32>
    %41 = arith.addf %38, %40 : vector<8x16xf32>
    %c0_23 = arith.constant 0 : index
    %c0_24 = arith.constant 0 : index
    %c0_25 = arith.constant 0 : index
    %42 = vector.load %arg7[%c0_23, %c0_24, %c0_25] : memref<1x8x16xf32, #tpu.memory_space<vmem>>, vector<1x8x16xf32>
    %43 = vector.shape_cast %42 : vector<1x8x16xf32> to vector<8x16xf32>
    %44 = vector.shape_cast %41 : vector<8x16xf32> to vector<1x8x16xf32>
    tpu.vector_store %arg7[%c0_23, %c0_24, %c0_25], %44 {strides = array<i32>} : memref<1x8x16xf32, #tpu.memory_space<vmem>>, vector<1x8x16xf32>,
    return
  }
  func.func @transform_0(%arg0: i32, %arg1: i32) -> (i32, i32, i32) {
    %c0_i32 = arith.constant 0 : i32
    %c0_i32_0 = arith.constant 0 : i32
    return %arg0, %arg1, %c0_i32 : i32, i32, i32
  }
  func.func @transform_1(%arg0: i32, %arg1: i32) -> (i32, i32, i32) {
    %c1_i32 = arith.constant 1 : i32
    %0 = arith.muli %arg1, %c1_i32 : i32
    %c1_i32_0 = arith.constant 1 : i32
    %1 = arith.subi %0, %c1_i32_0 : i32
    %c0_i32 = arith.constant 0 : i32
    %2 = arith.maxsi %1, %c0_i32 : i32
    %c0_i32_1 = arith.constant 0 : i32
    %c0_i32_2 = arith.constant 0 : i32
    return %arg0, %2, %c0_i32_1 : i32, i32, i32
  }
  func.func @transform_2(%arg0: i32, %arg1: i32) -> (i32, i32, i32) {
    %c1_i32 = arith.constant 1 : i32
    %0 = arith.addi %arg1, %c1_i32 : i32
    %c1_i32_0 = arith.constant 1 : i32
    %1 = arith.muli %0, %c1_i32_0 : i32
    %c0_i32 = arith.constant 0 : i32
    %2 = arith.minsi %1, %c0_i32 : i32
    %c0_i32_1 = arith.constant 0 : i32
    %c0_i32_2 = arith.constant 0 : i32
    return %arg0, %2, %c0_i32_1 : i32, i32, i32
  }
  func.func @transform_3(%arg0: i32, %arg1: i32) -> (i32, i32, i32) {
    %c0_i32 = arith.constant 0 : i32
    %c0_i32_0 = arith.constant 0 : i32
    %c0_i32_1 = arith.constant 0 : i32
    %c0_i32_2 = arith.constant 0 : i32
    return %c0_i32, %c0_i32_0, %c0_i32_1 : i32, i32, i32
  }
  func.func @transform_4(%arg0: i32, %arg1: i32) -> (i32, i32) {
    %c0_i32 = arith.constant 0 : i32
    %c0_i32_0 = arith.constant 0 : i32
    %c0_i32_1 = arith.constant 0 : i32
    return %c0_i32, %c0_i32_0 : i32, i32
  }
  func.func @transform_5(%arg0: i32, %arg1: i32) -> (i32, i32, i32) {
    %c0_i32 = arith.constant 0 : i32
    %c0_i32_0 = arith.constant 0 : i32
    return %arg0, %arg1, %c0_i32 : i32, i32, i32
  }
}

</mosaic_0001>

<llo_original>
// kernel: conv_forward.1
$region0: #{conv_forward.1}
  #allocation0 [shape = 'u32[]', space=smem, size = 0x4, offset = 0x4, fixed_abs, tag = 'smem constant byte address 0x4 - core index']
  #allocation1 [shape = 'u32[144,128]{1,0:T(1,128)}', space=vmem, size = 0x12000, scoped, tag = 'internal scratch']
  %s0 = inlined_call_operand.hbm [shape: f32[2,8,32], index: 0, kind: input, shape index: {}, may-alias: {0,1,2}]
  %s1 = inlined_call_operand.hbm [shape: f32[2,8,32], index: 1, kind: input, shape index: {}, may-alias: {0,1,2}]
  %s2 = inlined_call_operand.hbm [shape: f32[2,8,32], index: 2, kind: input, shape index: {}, may-alias: {0,1,2}]
  %s3 = inlined_call_operand.hbm [shape: bf16[3,32,16], index: 3, kind: input, shape index: {}]
  %s4 = inlined_call_operand.hbm [shape: f32[1,16], index: 4, kind: input, shape index: {}]
  %s5 = inlined_call_operand.hbm [shape: f32[2,8,16], index: 5, kind: output, shape index: {}]
  %s6 = sld [smem:[#allocation0]]
  $region73: #{conv_forward.1} parent=0
    _
  %s8 = ssub.s32 1, %s6
  %s9 = scalar_select 0, %s8, %s6
  $region1: #{conv_forward.1} parent=0
    #allocation2 [shape = 'u8[8192]{0}', space=vmem, size = 0x2000, scoped, tag = 'input window, operand 0']
    #allocation3 [shape = 's32[2]{0}', space=sflag, size = 0x8, scoped, tag = 'scoped memory for conv_forward.1']
    #allocation4 [shape = 's32[2]{0}', space=sflag, size = 0x8, scoped, tag = 'scoped memory for conv_forward.1']
    #allocation5 [shape = 'u8[8192]{0}', space=vmem, size = 0x2000, scoped, tag = 'input window, operand 1']
    #allocation6 [shape = 's32[2]{0}', space=sflag, size = 0x8, scoped, tag = 'scoped memory for conv_forward.1']
    #allocation7 [shape = 'u8[8192]{0}', space=vmem, size = 0x2000, scoped, tag = 'input window, operand 2']
    #allocation8 [shape = 'u8[24576]{0}', space=vmem, size = 0x6000, scoped, tag = 'input window, operand 3, single buffered']
    #allocation9 [shape = 's32[1]{0}', space=sflag, size = 0x4, scoped, tag = 'scoped memory for conv_forward.1']
    #allocation10 [shape = 'u8[512]{0}', space=vmem, size = 0x400, scoped, tag = 'input window, operand 4, single buffered']
    #allocation11 [shape = 'u8[8192]{0}', space=vmem, size = 0x2000, scoped, tag = 'output window, operand 0']
    %10 = vsyncpa [#allocation3], 0
    %s11 = scalar_lea.sflag [#allocation3], 1
    %12 = vsyncpa %s11, 0
    %13 = vsyncpa [#allocation6], 0
    %s14 = scalar_lea.sflag [#allocation6], 1
    %15 = vsyncpa %s14, 0
    %16 = vsyncpa [#allocation9], 0
    %17 = vsyncpa [#allocation4], 0
    %s18 = scalar_lea.sflag [#allocation4], 1
    %19 = vsyncpa %s18, 0
    loop: start=0, step=1, limit=4
    $region2: #{conv_forward.1} parent=1 // loop_pre_header
      _
    $region3: #{conv_forward.1} parent=1 // loop_header
      %s21 = sphi 0, %s25
      %p22 = scmp.ge.s32.totalorder %s21, 4
      %s28 = sphi 0, %s40
      %s29 = sphi 0, %s36
      %s30 = sphi 0, %s28
      %s31 = sphi 0, %s29
      %s32 = sphi 0, %s30
      %s33 = sphi 0, %s31
      %s45 = sphi 0, %s47
      %s48 = sphi 0, %s45
      %s49 = sphi 0, %s48
      %s65 = sphi 0, %s49
      %s79 = sphi 0, %s81
      %s82 = sphi 0, %s79
      %s83 = sphi 0, %s82
      %s99 = sphi 0, %s83
      %s113 = sphi 0, %s115
      %s116 = sphi 0, %s113
      %s117 = sphi 0, %s116
      %s133 = sphi 0, %s117
      %s137 = sphi 0, %s137
      %s139 = sphi 0, %s137
      %s140 = sphi 0, %s139
      %s154 = sphi 0, %s140
      %s158 = sphi 0, %s158
      %s160 = sphi 0, %s158
      %s161 = sphi 0, %s160
      %s175 = sphi 0, %s161
      %s183 = sphi 0, %s185
      %s186 = sphi 0, %s183
      %s187 = sphi 0, %s186
      %s203 = sphi 0, %s187
    $region4: #{conv_forward.1} parent=1 // loop_header_branch
      %24 = sbr.rel (%p22) target = $region8
    $region5: #{conv_forward.1} parent=1 // loop_body
      %s26 = ssub.s32 %s21, 1
      %s27 = ssub.s32 %s21, 2
      %s34 = sadd.s32 1, %s29
      %p35 = scmp.ge.s32.totalorder %s34, 1
      %s36 = scalar_select %p35, 0, %s34
      %s37 = sadd.s32 1, %s28
      %s38 = scalar_select %p35, %s37, %s28
      %p39 = scmp.ge.s32.totalorder %s38, 2
      %s40 = scalar_select %p39, 0, %s38
      %s41 = ssub.s32 %s28, %s40
      %s42 = ssub.s32 %s29, %s36
      %s43 = sor.u32 %s41, %s42
      %p44 = scmp.eq.s32.totalorder %s43, 0
      %s46 = sadd.s32 %s45, 1
      %s47 = scalar_select %p44, %s45, %s46
      %p50 = pneg %p44
      %p51 = scmp.eq.s32.totalorder %s21, 1
      %p52 = por %p50, %p51
      %p53 = scmp.ne.s32.totalorder %s45, %s48
      %p54 = scmp.eq.s32.totalorder %s21, 0
      %p55 = por %p53, %p54
      %p56 = scmp.ne.s32.totalorder %s45, %s48
      %p57 = scmp.eq.s32.totalorder %s26, 1
      %p58 = por %p56, %p57
      %p59 = scmp.ne.s32.totalorder %s48, %s49
      %p60 = scmp.eq.s32.totalorder %s26, 0
      %p61 = por %p59, %p60
      %p62 = scmp.ne.s32.totalorder %s48, %s49
      %p63 = scmp.eq.s32.totalorder %s27, 1
      %p64 = por %p62, %p63
      %p66 = scmp.ne.s32.totalorder %s49, %s65
      %p67 = scmp.eq.s32.totalorder %s27, 0
      %p68 = por %p66, %p67
      %s69 = ssub.s32 %s29, 1
      %p70 = scmp.gt.s32.totalorder %s69, 0
      %s71 = scalar_select %p70, %s69, 0
      %s72 = ssub.s32 %s36, 1
      %p73 = scmp.gt.s32.totalorder %s72, 0
      %s74 = scalar_select %p73, %s72, 0
      %s75 = ssub.s32 %s28, %s40
      %s76 = ssub.s32 %s71, %s74
      %s77 = sor.u32 %s75, %s76
      %p78 = scmp.eq.s32.totalorder %s77, 0
      %s80 = sadd.s32 %s79, 1
      %s81 = scalar_select %p78, %s79, %s80
      %p84 = pneg %p78
      %p85 = scmp.eq.s32.totalorder %s21, 1
      %p86 = por %p84, %p85
      %p87 = scmp.ne.s32.totalorder %s79, %s82
      %p88 = scmp.eq.s32.totalorder %s21, 0
      %p89 = por %p87, %p88
      %p90 = scmp.ne.s32.totalorder %s79, %s82
      %p91 = scmp.eq.s32.totalorder %s26, 1
      %p92 = por %p90, %p91
      %p93 = scmp.ne.s32.totalorder %s82, %s83
      %p94 = scmp.eq.s32.totalorder %s26, 0
      %p95 = por %p93, %p94
      %p96 = scmp.ne.s32.totalorder %s82, %s83
      %p97 = scmp.eq.s32.totalorder %s27, 1
      %p98 = por %p96, %p97
      %p100 = scmp.ne.s32.totalorder %s83, %s99
      %p101 = scmp.eq.s32.totalorder %s27, 0
      %p102 = por %p100, %p101
      %s103 = sadd.s32 %s29, 1
      %p104 = scmp.lt.s32.totalorder %s103, 0
      %s105 = scalar_select %p104, %s103, 0
      %s106 = sadd.s32 %s36, 1
      %p107 = scmp.lt.s32.totalorder %s106, 0
      %s108 = scalar_select %p107, %s106, 0
      %s109 = ssub.s32 %s28, %s40
      %s110 = ssub.s32 %s105, %s108
      %s111 = sor.u32 %s109, %s110
      %p112 = scmp.eq.s32.totalorder %s111, 0
      %s114 = sadd.s32 %s113, 1
      %s115 = scalar_select %p112, %s113, %s114
      %p118 = pneg %p112
      %p119 = scmp.eq.s32.totalorder %s21, 1
      %p120 = por %p118, %p119
      %p121 = scmp.ne.s32.totalorder %s113, %s116
      %p122 = scmp.eq.s32.totalorder %s21, 0
      %p123 = por %p121, %p122
      %p124 = scmp.ne.s32.totalorder %s113, %s116
      %p125 = scmp.eq.s32.totalorder %s26, 1
      %p126 = por %p124, %p125
      %p127 = scmp.ne.s32.totalorder %s116, %s117
      %p128 = scmp.eq.s32.totalorder %s26, 0
      %p129 = por %p127, %p128
      %p130 = scmp.ne.s32.totalorder %s116, %s117
      %p131 = scmp.eq.s32.totalorder %s27, 1
      %p132 = por %p130, %p131
      %p134 = scmp.ne.s32.totalorder %s117, %s133
      %p135 = scmp.eq.s32.totalorder %s27, 0
      %p136 = por %p134, %p135
      %s138 = sadd.s32 %s137, 1
      %p141 = scmp.eq.s32.totalorder %s21, 1
      %p142 = scmp.ne.s32.totalorder %s137, %s139
      %p143 = scmp.eq.s32.totalorder %s21, 0
      %p144 = por %p142, %p143
      %p145 = scmp.ne.s32.totalorder %s137, %s139
      %p146 = scmp.eq.s32.totalorder %s26, 1
      %p147 = por %p145, %p146
      %p148 = scmp.ne.s32.totalorder %s139, %s140
      %p149 = scmp.eq.s32.totalorder %s26, 0
      %p150 = por %p148, %p149
      %p151 = scmp.ne.s32.totalorder %s139, %s140
      %p152 = scmp.eq.s32.totalorder %s27, 1
      %p153 = por %p151, %p152
      %p155 = scmp.ne.s32.totalorder %s140, %s154
      %p156 = scmp.eq.s32.totalorder %s27, 0
      %p157 = por %p155, %p156
      %s159 = sadd.s32 %s158, 1
      %p162 = scmp.eq.s32.totalorder %s21, 1
      %p163 = scmp.ne.s32.totalorder %s158, %s160
      %p164 = scmp.eq.s32.totalorder %s21, 0
      %p165 = por %p163, %p164
      %p166 = scmp.ne.s32.totalorder %s158, %s160
      %p167 = scmp.eq.s32.totalorder %s26, 1
      %p168 = por %p166, %p167
      %p169 = scmp.ne.s32.totalorder %s160, %s161
      %p170 = scmp.eq.s32.totalorder %s26, 0
      %p171 = por %p169, %p170
      %p172 = scmp.ne.s32.totalorder %s160, %s161
      %p173 = scmp.eq.s32.totalorder %s27, 1
      %p174 = por %p172, %p173
      %p176 = scmp.ne.s32.totalorder %s161, %s175
      %p177 = scmp.eq.s32.totalorder %s27, 0
      %p178 = por %p176, %p177
      %s179 = ssub.s32 %s28, %s40
      %s180 = ssub.s32 %s29, %s36
      %s181 = sor.u32 %s179, %s180
      %p182 = scmp.eq.s32.totalorder %s181, 0
      %s184 = sadd.s32 %s183, 1
      %s185 = scalar_select %p182, %s183, %s184
      %p188 = pneg %p182
      %p189 = scmp.eq.s32.totalorder %s21, 1
      %p190 = por %p188, %p189
      %p191 = scmp.ne.s32.totalorder %s183, %s186
      %p192 = scmp.eq.s32.totalorder %s21, 0
      %p193 = por %p191, %p192
      %p194 = scmp.ne.s32.totalorder %s183, %s186
      %p195 = scmp.eq.s32.totalorder %s26, 1
      %p196 = por %p194, %p195
      %p197 = scmp.ne.s32.totalorder %s186, %s187
      %p198 = scmp.eq.s32.totalorder %s26, 0
      %p199 = por %p197, %p198
      %p200 = scmp.ne.s32.totalorder %s186, %s187
      %p201 = scmp.eq.s32.totalorder %s27, 1
      %p202 = por %p200, %p201
      %p204 = scmp.ne.s32.totalorder %s187, %s203
      %p205 = scmp.eq.s32.totalorder %s27, 0
      %p206 = por %p204, %p205
      %p207 = scmp.le.s32.totalorder 1, %s21
      %p208 = scmp.lt.s32.totalorder %s21, 3
      %p209 = pnand %p207, %p208
      %p210 = pneg %p209
      // Predicated region
      $region9: #{conv_forward.1} parent=5 // pred_check
        _
      $region10: #{conv_forward.1} parent=5 // pred_check_branch
        %212 = sbr.rel (%p209) target = $region12
      $region11: #{conv_forward.1} parent=5 // pred_region
        %s213 = ssub.s32 %s21, 1
        // Predicated region
        $region13: #{conv_forward.1} parent=11 // pred_check
          %p214 = pneg %p150
        $region14: #{conv_forward.1} parent=11 // pred_check_branch
          %216 = sbr.rel (%p214) target = $region16
        $region15: #{conv_forward.1} parent=11 // pred_region
          %s218 = ssub.s32 768, 768
          %219 = vsyncadd [#allocation9], %s218
          %s220 = sshll.u32 [#allocation8], 4
          %s221 = int_to_ptr.vmem [resolvable:$true] %s220
          %226 = dma.hbm_to_vmem [thread:$0]  %s3, 768, %s221, [#allocation9], 64, 64, 4
        $region16: #{conv_forward.1} parent=11 // pred_fallthru
          _
        // Predicated region
        $region17: #{conv_forward.1} parent=11 // pred_check
          %p227 = pneg %p171
        $region18: #{conv_forward.1} parent=11 // pred_check_branch
          %229 = sbr.rel (%p227) target = $region20
        $region19: #{conv_forward.1} parent=11 // pred_region
          %s231 = ssub.s32 16, 16
          %232 = vsyncadd [#allocation9], %s231
          %s234 = sshll.u32 [#allocation10], 4
          %s235 = int_to_ptr.vmem [resolvable:$true] %s234
          %237 = dma.hbm_to_vmem [thread:$0]  %s4, 16, %s235, [#allocation9]
        $region20: #{conv_forward.1} parent=11 // pred_fallthru
          _
      $region12: #{conv_forward.1} parent=5 // pred_fallthru
        _
      %p238 = scmp.lt.s32.totalorder %s21, 2
      // Predicated region
      $region21: #{conv_forward.1} parent=5 // pred_check
        %p239 = pneg %p238
      $region22: #{conv_forward.1} parent=5 // pred_check_branch
        %241 = sbr.rel (%p239) target = $region24
      $region23: #{conv_forward.1} parent=5 // pred_region
        // Predicated region
        $region25: #{conv_forward.1} parent=23 // pred_check
          %p242 = pneg %p55
        $region26: #{conv_forward.1} parent=23 // pred_check_branch
          %244 = sbr.rel (%p242) target = $region28
        $region27: #{conv_forward.1} parent=23 // pred_region
          %s245 = sand.u32 %s45, 1
          %s246 = scalar_lea.sflag [#allocation3], %s245
          %s247 = sand.u32 %s45, 1
          %s248 = smul.addr %s247, 8
          %s249 = scalar_lea.vmem [#allocation2], %s248
          %s251 = ssub.s32 128, 128
          %252 = vsyncadd %s246, %s251
          %s253 = sadd.s32 %s29, %s28
          %s254 = smul.addr %s253, 128
          %s255 = scalar_lea.hbm %s0, %s254
          %s257 = sshll.u32 %s249, 4
          %s258 = int_to_ptr.vmem [resolvable:$true] %s257
          %260 = dma.hbm_to_vmem [thread:$0]  %s255, 128, %s258, %s246
        $region28: #{conv_forward.1} parent=23 // pred_fallthru
          _
        // Predicated region
        $region29: #{conv_forward.1} parent=23 // pred_check
          %p261 = pneg %p89
        $region30: #{conv_forward.1} parent=23 // pred_check_branch
          %263 = sbr.rel (%p261) target = $region32
        $region31: #{conv_forward.1} parent=23 // pred_region
          %s264 = sand.u32 %s21, 1
          %s265 = scalar_lea.sflag [#allocation6], %s264
          %s266 = sand.u32 %s79, 1
          %s267 = smul.addr %s266, 8
          %s268 = scalar_lea.vmem [#allocation5], %s267
          %s269 = ssub.s32 %s29, 1
          %p270 = scmp.gt.s32.totalorder %s269, 0
          %s271 = scalar_select %p270, %s269, 0
          %s273 = ssub.s32 128, 128
          %274 = vsyncadd %s265, %s273
          %s275 = sadd.s32 %s271, %s28
          %s276 = smul.addr %s275, 128
          %s277 = scalar_lea.hbm %s1, %s276
          %s279 = sshll.u32 %s268, 4
          %s280 = int_to_ptr.vmem [resolvable:$true] %s279
          %282 = dma.hbm_to_vmem [thread:$0]  %s277, 128, %s280, %s265
        $region32: #{conv_forward.1} parent=23 // pred_fallthru
          _
        // Predicated region
        $region33: #{conv_forward.1} parent=23 // pred_check
          %p283 = pneg %p123
        $region34: #{conv_forward.1} parent=23 // pred_check_branch
          %285 = sbr.rel (%p283) target = $region36
        $region35: #{conv_forward.1} parent=23 // pred_region
          %s286 = sand.u32 %s21, 1
          %s287 = scalar_lea.sflag [#allocation6], %s286
          %s288 = sand.u32 %s113, 1
          %s289 = smul.addr %s288, 8
          %s290 = scalar_lea.vmem [#allocation7], %s289
          %s291 = sadd.s32 %s29, 1
          %p292 = scmp.lt.s32.totalorder %s291, 0
          %s293 = scalar_select %p292, %s291, 0
          %s295 = ssub.s32 128, 128
          %296 = vsyncadd %s287, %s295
          %s297 = sadd.s32 %s293, %s28
          %s298 = smul.addr %s297, 128
          %s299 = scalar_lea.hbm %s2, %s298
          %s301 = sshll.u32 %s290, 4
          %s302 = int_to_ptr.vmem [resolvable:$true] %s301
          %304 = dma.hbm_to_vmem [thread:$0]  %s299, 128, %s302, %s287
        $region36: #{conv_forward.1} parent=23 // pred_fallthru
          _
      $region24: #{conv_forward.1} parent=5 // pred_fallthru
        _
      %p305 = scmp.le.s32.totalorder 1, %s21
      %p306 = scmp.lt.s32.totalorder %s21, 3
      %p307 = pnand %p305, %p306
      %p308 = pneg %p307
      // Predicated region
      $region37: #{conv_forward.1} parent=5 // pred_check
        _
      $region38: #{conv_forward.1} parent=5 // pred_check_branch
        %310 = sbr.rel (%p307) target = $region40
      $region39: #{conv_forward.1} parent=5 // pred_region
        %s311 = ssub.s32 %s21, 1
        %s312 = sand.u32 %s48, 1
        %s313 = scalar_lea.sflag [#allocation3], %s312
        %s314 = sand.u32 %s48, 1
        %s315 = smul.addr %s314, 8
        %s316 = scalar_lea.vmem [#allocation2], %s315
        // Predicated region
        $region41: #{conv_forward.1} parent=39 // pred_check
          %p317 = pneg %p61
        $region42: #{conv_forward.1} parent=39 // pred_check_branch
          %319 = sbr.rel (%p317) target = $region44
        $region43: #{conv_forward.1} parent=39 // pred_region
          %320 = dma.done %s313, 128
        $region44: #{conv_forward.1} parent=39 // pred_fallthru
          _
        %s321 = sand.u32 %s26, 1
        %s322 = scalar_lea.sflag [#allocation6], %s321
        %s323 = sand.u32 %s82, 1
        %s324 = smul.addr %s323, 8
        %s325 = scalar_lea.vmem [#allocation5], %s324
        // Predicated region
        $region45: #{conv_forward.1} parent=39 // pred_check
          %p326 = pneg %p95
        $region46: #{conv_forward.1} parent=39 // pred_check_branch
          %328 = sbr.rel (%p326) target = $region48
        $region47: #{conv_forward.1} parent=39 // pred_region
          %329 = dma.done %s322, 128
        $region48: #{conv_forward.1} parent=39 // pred_fallthru
          _
        %s330 = sand.u32 %s26, 1
        %s331 = scalar_lea.sflag [#allocation6], %s330
        %s332 = sand.u32 %s116, 1
        %s333 = smul.addr %s332, 8
        %s334 = scalar_lea.vmem [#allocation7], %s333
        // Predicated region
        $region49: #{conv_forward.1} parent=39 // pred_check
          %p335 = pneg %p129
        $region50: #{conv_forward.1} parent=39 // pred_check_branch
          %337 = sbr.rel (%p335) target = $region52
        $region51: #{conv_forward.1} parent=39 // pred_region
          %338 = dma.done %s331, 128
        $region52: #{conv_forward.1} parent=39 // pred_fallthru
          _
        // Predicated region
        $region53: #{conv_forward.1} parent=39 // pred_check
          %p339 = pneg %p150
        $region54: #{conv_forward.1} parent=39 // pred_check_branch
          %341 = sbr.rel (%p339) target = $region56
        $region55: #{conv_forward.1} parent=39 // pred_region
          %342 = dma.done [#allocation9], 768
        $region56: #{conv_forward.1} parent=39 // pred_fallthru
          _
        // Predicated region
        $region57: #{conv_forward.1} parent=39 // pred_check
          %p343 = pneg %p171
        $region58: #{conv_forward.1} parent=39 // pred_check_branch
          %345 = sbr.rel (%p343) target = $region60
        $region59: #{conv_forward.1} parent=39 // pred_region
          %346 = dma.done [#allocation9], 16
        $region60: #{conv_forward.1} parent=39 // pred_fallthru
          _
        %s347 = sand.u32 %s48, 1
        %s348 = scalar_lea.sflag [#allocation3], %s347
        %s349 = sand.u32 %s48, 1
        %s350 = smul.addr %s349, 8
        %s351 = scalar_lea.vmem [#allocation2], %s350
        %p352 = pneg %p61
        %p353 = pneg %p58
        %s354 = sand.u32 %s26, 1
        %s355 = scalar_lea.sflag [#allocation6], %s354
        %s356 = sand.u32 %s82, 1
        %s357 = smul.addr %s356, 8
        %s358 = scalar_lea.vmem [#allocation5], %s357
        %p359 = pneg %p95
        %p360 = pneg %p92
        %s361 = sand.u32 %s26, 1
        %s362 = scalar_lea.sflag [#allocation6], %s361
        %s363 = sand.u32 %s116, 1
        %s364 = smul.addr %s363, 8
        %s365 = scalar_lea.vmem [#allocation7], %s364
        %p366 = pneg %p129
        %p367 = pneg %p126
        %p368 = pneg %p150
        %p369 = pneg %p147
        %p370 = pneg %p171
        %p371 = pneg %p168
        %p372 = pneg %p199
        %p373 = pneg %p196
        %s374 = sand.u32 %s186, 1
        %s375 = scalar_lea.sflag [#allocation4], %s374
        %s376 = sand.u32 %s186, 1
        %s377 = smul.addr %s376, 8
        %s378 = scalar_lea.vmem [#allocation11], %s377
        %s379 = ssub.s32 %s31, 1
        %p380 = scmp.gt.s32.totalorder %s379, 0
        %s381 = scalar_select %p380, %s379, 0
        %s382 = sadd.s32 %s31, 1
        %p383 = scmp.lt.s32.totalorder %s382, 0
        %s384 = scalar_select %p383, %s382, 0
        %v386 = vld [vmem:[%s325] sm:$0xff]
        %v387 = vld [vmem:[%s316] sm:$0xff]
        %v388 = vlaneseq
        %v389 = vshrl.u32 %v388, 7
        %v390 = vadd.s32 %v389, 8
        %s391 = smul.u32 %s31, 8
        %s392 = ssub.s32 %s391, 8
        %v393 = vstv %s392
        %v394 = vadd.s32 %v389, %v393
        %v395 = vadd.s32 %v390, %v393
        %vm396 = vcmp.ge.s32.totalorder %v394, 0
        %vm397 = vcmp.ge.s32.totalorder %v395, 0
        %vm398 = vcmp.lt.s32.totalorder %v394, 8
        %vm399 = vcmp.lt.s32.totalorder %v395, 8
        %vm400 = vmand %vm396, %vm398
        %vm401 = vmand %vm397, %vm399
        %v402 = vsel %vm400, 1, 0
        %v403 = vsel %vm401, 1, 0
        %vm404 = vcmp.eq.s32.totalorder %v402, 1
        %vm405 = vcmp.eq.s32.totalorder %v403, 1
        %v406 = vsel %vm404, %v386, 0.0
        %v407 = vsel %vm405, %v387, 0.0
        %v408 = vpack.c.bf16 %v407, %v406
        %v409 = vld [vmem:[#allocation8] sm:$0xf]
        %v410 = vld [vmem:[#allocation8 + $0x4] sm:$0xf]
        %v411 = vld [vmem:[#allocation8 + $0x8] sm:$0xf]
        %v412 = vld [vmem:[#allocation8 + $0xc] sm:$0xf]
        %s413 = scalar_lea.vmem [#allocation8], 16
        %v414 = vld [vmem:[%s413] sm:$0xf]
        %v415 = vld [vmem:[%s413 + $0x4] sm:$0xf]
        %v416 = vld [vmem:[%s413 + $0x8] sm:$0xf]
        %v417 = vld [vmem:[%s413 + $0xc] sm:$0xf]
        %v419 = vshrl.u32 %v408, 16
        %v421 = vrot.slane %v419, 3
        %v422 = vshll.u32 %v408, 16
        %v424 = vrot.slane %v422, 4
        %v425 = vor.u32 %v421, %v424
        %v430 = vunpack.c.l.b16 %v414
        %v431 = vunpack.c.l.b16 %v415
        %v432 = vunpack.c.l.b16 %v416
        %v433 = vunpack.c.l.b16 %v417
        %v434 = vpack.c.b16 %v431, %v430
        %v435 = vpack.c.b16 %v433, %v432
        %vm438 = vcmask 261120
        %v440 = vsel %vm438, %v425, 0
        %442 = vmatprep.subr.bf16.mxu0 0
        %443 = vmatpush1.bf16.msra.mxu0 %v434
        %444 = vmatprep.subr.bf16.mxu0 0
        %445 = vmatpush1.bf16.msra.mxu0 %v435
        %446 = vmatprep.subr.bf16.mxu0 0
        %447 = vmatpush1.bf16.msra.mxu0 0
        %448 = vmatprep.subr.bf16.mxu0 0
        %449 = vmatpush1.bf16.msra.mxu0 0
        %450 = vmatprep.subr.bf16.mxu0 0
        %451 = vmatpush1.bf16.msra.mxu0 0
        %452 = vmatprep.subr.bf16.mxu0 0
        %453 = vmatpush1.bf16.msra.mxu0 0
        %454 = vmatprep.subr.bf16.mxu0 0
        %455 = vmatpush1.bf16.msra.mxu0 0
        %456 = vmatprep.subr.bf16.mxu0 0
        %457 = vmatpush1.bf16.msra.mxu0 0
        %458 = vmatprep.subr.bf16.mxu0 0
        %459 = vmatpush1.bf16.msra.mxu0 0
        %460 = vmatprep.subr.bf16.mxu0 0
        %461 = vmatpush1.bf16.msra.mxu0 0
        %462 = vmatprep.subr.bf16.mxu0 0
        %463 = vmatpush1.bf16.msra.mxu0 0
        %464 = vmatprep.subr.bf16.mxu0 0
        %465 = vmatpush1.bf16.msra.mxu0 0
        %466 = vmatprep.subr.bf16.mxu0 0
        %467 = vmatpush1.bf16.msra.mxu0 0
        %468 = vmatprep.subr.bf16.mxu0 0
        %469 = vmatpush1.bf16.msra.mxu0 0
        %470 = vmatprep.subr.bf16.mxu0 0
        %471 = vmatpush1.bf16.msra.mxu0 0
        %472 = vmatprep.subr.bf16.mxu0 0
        %473 = vmatpush1.bf16.msra.mxu0 0
        %474 = vmatprep.mubr.bf16.mxu0 0
        %475 = vmatmul.mubr.bf16.gmra.mrb[0].mxu0 %v440
        %v476 = vpop.f32.mrb[0].mxu0
        %v477 = vadd.f32 0.0, %v476
        %v478 = vpop.f32.mrb[0].mxu0
        %v479 = vpop.f32.mrb[0].mxu0
        %v480 = vpop.f32.mrb[0].mxu0
        %481 = vdwg.mxu0
        %v483 = vrot.slane %v408, 3
        %v488 = vunpack.c.l.b16 %v409
        %v489 = vunpack.c.l.b16 %v410
        %v490 = vunpack.c.l.b16 %v411
        %v491 = vunpack.c.l.b16 %v412
        %v492 = vpack.c.b16 %v489, %v488
        %v493 = vpack.c.b16 %v491, %v490
        %v497 = vsel %vm438, %v483, 0
        %499 = vmatprep.subr.bf16.mxu0 0
        %500 = vmatpush1.bf16.msra.mxu0 %v492
        %501 = vmatprep.subr.bf16.mxu0 0
        %502 = vmatpush1.bf16.msra.mxu0 %v493
        %503 = vmatprep.subr.bf16.mxu0 0
        %504 = vmatpush1.bf16.msra.mxu0 0
        %505 = vmatprep.subr.bf16.mxu0 0
        %506 = vmatpush1.bf16.msra.mxu0 0
        %507 = vmatprep.subr.bf16.mxu0 0
        %508 = vmatpush1.bf16.msra.mxu0 0
        %509 = vmatprep.subr.bf16.mxu0 0
        %510 = vmatpush1.bf16.msra.mxu0 0
        %511 = vmatprep.subr.bf16.mxu0 0
        %512 = vmatpush1.bf16.msra.mxu0 0
        %513 = vmatprep.subr.bf16.mxu0 0
        %514 = vmatpush1.bf16.msra.mxu0 0
        %515 = vmatprep.subr.bf16.mxu0 0
        %516 = vmatpush1.bf16.msra.mxu0 0
        %517 = vmatprep.subr.bf16.mxu0 0
        %518 = vmatpush1.bf16.msra.mxu0 0
        %519 = vmatprep.subr.bf16.mxu0 0
        %520 = vmatpush1.bf16.msra.mxu0 0
        %521 = vmatprep.subr.bf16.mxu0 0
        %522 = vmatpush1.bf16.msra.mxu0 0
        %523 = vmatprep.subr.bf16.mxu0 0
        %524 = vmatpush1.bf16.msra.mxu0 0
        %525 = vmatprep.subr.bf16.mxu0 0
        %526 = vmatpush1.bf16.msra.mxu0 0
        %527 = vmatprep.subr.bf16.mxu0 0
        %528 = vmatpush1.bf16.msra.mxu0 0
        %529 = vmatprep.subr.bf16.mxu0 0
        %530 = vmatpush1.bf16.msra.mxu0 0
        %531 = vmatprep.mubr.bf16.mxu0 0
        %532 = vmatmul.mubr.bf16.gmra.mrb[0].mxu0 %v497
        %v533 = vpop.f32.mrb[0].mxu0
        %v534 = vadd.f32 %v477, %v533
        %v535 = vpop.f32.mrb[0].mxu0
        %v536 = vpop.f32.mrb[0].mxu0
        %v537 = vpop.f32.mrb[0].mxu0
        %538 = vdwg.mxu0
        %s539 = scalar_lea.vmem [#allocation8], 32
        %v540 = vld [vmem:[%s539] sm:$0xf]
        %v541 = vld [vmem:[%s539 + $0x4] sm:$0xf]
        %v542 = vld [vmem:[%s539 + $0x8] sm:$0xf]
        %v543 = vld [vmem:[%s539 + $0xc] sm:$0xf]
        %v544 = vrot.slane %v408, 4
        %v549 = vunpack.c.l.b16 %v540
        %v550 = vunpack.c.l.b16 %v541
        %v551 = vunpack.c.l.b16 %v542
        %v552 = vunpack.c.l.b16 %v543
        %v553 = vpack.c.b16 %v550, %v549
        %v554 = vpack.c.b16 %v552, %v551
        %v558 = vsel %vm438, %v544, 0
        %560 = vmatprep.subr.bf16.mxu0 0
        %561 = vmatpush1.bf16.msra.mxu0 %v553
        %562 = vmatprep.subr.bf16.mxu0 0
        %563 = vmatpush1.bf16.msra.mxu0 %v554
        %564 = vmatprep.subr.bf16.mxu0 0
        %565 = vmatpush1.bf16.msra.mxu0 0
        %566 = vmatprep.subr.bf16.mxu0 0
        %567 = vmatpush1.bf16.msra.mxu0 0
        %568 = vmatprep.subr.bf16.mxu0 0
        %569 = vmatpush1.bf16.msra.mxu0 0
        %570 = vmatprep.subr.bf16.mxu0 0
        %571 = vmatpush1.bf16.msra.mxu0 0
        %572 = vmatprep.subr.bf16.mxu0 0
        %573 = vmatpush1.bf16.msra.mxu0 0
        %574 = vmatprep.subr.bf16.mxu0 0
        %575 = vmatpush1.bf16.msra.mxu0 0
        %576 = vmatprep.subr.bf16.mxu0 0
        %577 = vmatpush1.bf16.msra.mxu0 0
        %578 = vmatprep.subr.bf16.mxu0 0
        %579 = vmatpush1.bf16.msra.mxu0 0
        %580 = vmatprep.subr.bf16.mxu0 0
        %581 = vmatpush1.bf16.msra.mxu0 0
        %582 = vmatprep.subr.bf16.mxu0 0
        %583 = vmatpush1.bf16.msra.mxu0 0
        %584 = vmatprep.subr.bf16.mxu0 0
        %585 = vmatpush1.bf16.msra.mxu0 0
        %586 = vmatprep.subr.bf16.mxu0 0
        %587 = vmatpush1.bf16.msra.mxu0 0
        %588 = vmatprep.subr.bf16.mxu0 0
        %589 = vmatpush1.bf16.msra.mxu0 0
        %590 = vmatprep.subr.bf16.mxu0 0
        %591 = vmatpush1.bf16.msra.mxu0 0
        %592 = vmatprep.mubr.bf16.mxu0 0
        %593 = vmatmul.mubr.bf16.gmra.mrb[0].mxu0 %v558
        %v594 = vpop.f32.mrb[0].mxu0
        %v595 = vadd.f32 0.0, %v594
        %v596 = vpop.f32.mrb[0].mxu0
        %v597 = vpop.f32.mrb[0].mxu0
        %v598 = vpop.f32.mrb[0].mxu0
        %599 = vdwg.mxu0
        %v600 = vadd.f32 %v534, %v595
        %v601 = vld [vmem:[#allocation10] sm:$0x1]
        %v603 = vlaneseq
        %v604 = vshrl.u32 %v603, 7
        %v605 = vsub.s32 0, %v604
        %v606 = vrot.slane %v601, %v605
        %v608 = vadd.f32 %v600, %v606
        %vm609 = vcmask 130048
        %610 = vst.msk [vmem:[%s378] sm:$0xff] %vm609, %v608
        %s611 = sand.u32 %s186, 1
        %s612 = scalar_lea.sflag [#allocation4], %s611
        %s613 = sand.u32 %s186, 1
        %s614 = smul.addr %s613, 8
        %s615 = scalar_lea.vmem [#allocation11], %s614
        // Predicated region
        $region61: #{conv_forward.1} parent=39 // pred_check
          %p616 = pneg %p196
        $region62: #{conv_forward.1} parent=39 // pred_check_branch
          %618 = sbr.rel (%p616) target = $region64
        $region63: #{conv_forward.1} parent=39 // pred_region
          %s620 = ssub.s32 128, 128
          %621 = vsyncadd %s612, %s620
          %s622 = sadd.s32 %s31, %s30
          %s623 = smul.addr %s622, 128
          %s624 = scalar_lea.hbm %s5, %s623
          %s626 = sshll.u32 %s615, 4
          %s627 = int_to_ptr.vmem [resolvable:$true] %s626
          %629 = dma.vmem_to_hbm [thread:$0]  %s627, 128, %s624, %s612
        $region64: #{conv_forward.1} parent=39 // pred_fallthru
          _
      $region40: #{conv_forward.1} parent=5 // pred_fallthru
        _
      %p630 = scmp.le.s32.totalorder 2, %s21
      // Predicated region
      $region65: #{conv_forward.1} parent=5 // pred_check
        %p631 = pneg %p630
      $region66: #{conv_forward.1} parent=5 // pred_check_branch
        %633 = sbr.rel (%p631) target = $region68
      $region67: #{conv_forward.1} parent=5 // pred_region
        %s634 = ssub.s32 %s21, 2
        // Predicated region
        $region69: #{conv_forward.1} parent=67 // pred_check
          %p635 = pneg %p202
        $region70: #{conv_forward.1} parent=67 // pred_check_branch
          %637 = sbr.rel (%p635) target = $region72
        $region71: #{conv_forward.1} parent=67 // pred_region
          %s638 = sand.u32 %s187, 1
          %s639 = scalar_lea.sflag [#allocation4], %s638
          %s640 = sand.u32 %s187, 1
          %s641 = smul.addr %s640, 8
          %s642 = scalar_lea.vmem [#allocation11], %s641
          %643 = dma.done %s639, 128
        $region72: #{conv_forward.1} parent=67 // pred_fallthru
          _
      $region68: #{conv_forward.1} parent=5 // pred_fallthru
        _
    $region6: #{conv_forward.1} parent=1 // loop_footer
      %s25 = sadd.s32 1, %s21
    $region7: #{conv_forward.1} parent=1 // loop_footer_branch
      %20 = sbr.rel target = $region3
    $region8: #{conv_forward.1} parent=1 // loop_exit
      _
    %644 = vsyncpa [#allocation3], 1
    %s645 = scalar_lea.sflag [#allocation3], 1
    %646 = vsyncpa %s645, 1
    %647 = vsyncpa [#allocation6], 1
    %s648 = scalar_lea.sflag [#allocation6], 1
    %649 = vsyncpa %s648, 1
    %650 = vsyncpa [#allocation9], 1
    %651 = vsyncpa [#allocation4], 1
    %s652 = scalar_lea.sflag [#allocation4], 1
    %653 = vsyncpa %s652, 1

</llo_original>
